<compile_context>
chip_gen: v6e
topology: v6e:2x2x1
jax: 0.10.0
libtpu: 0.0.40
codegen_flags: <defaults>
</compile_context>

<pallas_src>
import functools

import jax
import jax.numpy as jnp
from jax.experimental import pallas as pl
from jax.experimental.pallas import tpu as pltpu


def _round_up(x, m):
    return ((x + m - 1) // m) * m


def _vmem_limit_bytes():
    """Generation-aware VMEM budget (headroom left for double buffering)."""
    cap = 64 * 1024 * 1024            # conservative fallback (v7x physical)
    try:
        cap = int(pltpu.get_tpu_info().vmem_capacity_bytes)
    except Exception:
        pass
    return max(32 * 1024 * 1024, min((cap * 3) // 4, 100 * 1024 * 1024))


_VMEM_LIMIT = _vmem_limit_bytes()


# ----------------------------- Pallas kernels ------------------------------

def _deconv_stats_kernel(p_ref, w_ref, s_ref):
    """Pass 1: polyphase deconv matmul, emit only BN sum / sum-of-squares.

    p_ref : (1, tr, Qwp, Kcp)  bf16 tap-folded patch tile
    w_ref : (Kcp, CoutB)       bf16 phase-folded weight
    s_ref : (1, 1, 2, CoutB)   f32 rows = per-channel sum / sum-sq
    """
    tr, qwp, kc = p_ref.shape[1], p_ref.shape[2], p_ref.shape[3]
    lhs = p_ref[0].reshape(tr * qwp, kc)
    acc = jnp.dot(lhs, w_ref[...], preferred_element_type=jnp.float32)
    csum = jnp.sum(acc, axis=0, keepdims=True)
    csq = jnp.sum(acc * acc, axis=0, keepdims=True)
    s_ref[0, 0] = jnp.concatenate([csum, csq], axis=0)


def _deconv_norm_kernel(p_ref, w_ref, sc_ref, sh_ref, o_ref, *, use_relu):
    """Pass 2: recompute the cheap matmul, apply BN scale/shift (+ReLU)."""
    tr, qwp, kc = p_ref.shape[1], p_ref.shape[2], p_ref.shape[3]
    coutb = o_ref.shape[3]
    lhs = p_ref[0].reshape(tr * qwp, kc)
    acc = jnp.dot(lhs, w_ref[...], preferred_element_type=jnp.float32)
    out = acc * sc_ref[...] + sh_ref[...]
    if use_relu:
        out = jnp.maximum(out, 0.0)
    o_ref[0] = out.reshape(tr, qwp, coutb).astype(o_ref.dtype)


def _relu_kernel(x_ref, o_ref):
    o_ref[...] = jnp.maximum(x_ref[...], 0.0).astype(o_ref.dtype)


# ------------------------------ kernel wrappers -----------------------------

def _deconv_stats(patch, wbig, tr):
    N, Qhp, Qwp, Kcp = patch.shape
    CoutB = wbig.shape[1]
    R = Qhp // tr
    return pl.pallas_call(
        _deconv_stats_kernel,
        out_shape=jax.ShapeDtypeStruct((N, R, 2, CoutB), jnp.float32),
        grid=(N, R),
        in_specs=[pl.BlockSpec((1, tr, Qwp, Kcp), lambda n, i: (n, i, 0, 0)),
                  pl.BlockSpec((Kcp, CoutB), lambda n, i: (0, 0))],
        out_specs=pl.BlockSpec((1, 1, 2, CoutB), lambda n, i: (n, i, 0, 0)),
        compiler_params=pltpu.CompilerParams(
            dimension_semantics=("parallel", "parallel"),
            vmem_limit_bytes=_VMEM_LIMIT),
    )(patch, wbig)


def _deconv_norm(patch, wbig, scale, shift, tr, use_relu):
    N, Qhp, Qwp, Kcp = patch.shape
    CoutB = wbig.shape[1]
    R = Qhp // tr
    return pl.pallas_call(
        functools.partial(_deconv_norm_kernel, use_relu=use_relu),
        out_shape=jax.ShapeDtypeStruct((N, Qhp, Qwp, CoutB), jnp.float32),
        grid=(N, R),
        in_specs=[pl.BlockSpec((1, tr, Qwp, Kcp), lambda n, i: (n, i, 0, 0)),
                  pl.BlockSpec((Kcp, CoutB), lambda n, i: (0, 0)),
                  pl.BlockSpec((1, CoutB), lambda n, i: (0, 0)),
                  pl.BlockSpec((1, CoutB), lambda n, i: (0, 0))],
        out_specs=pl.BlockSpec((1, tr, Qwp, CoutB), lambda n, i: (n, i, 0, 0)),
        compiler_params=pltpu.CompilerParams(
            dimension_semantics=("parallel", "parallel"),
            vmem_limit_bytes=_VMEM_LIMIT),
    )(patch, wbig, scale, shift)


def relu_pallas(x):
    """Pad-free tiled elementwise ReLU (last dim kept as the lane axis)."""
    shp, dt = x.shape, x.dtype
    L = shp[-1]
    M = x.size // L
    x2 = x.reshape(M, L)
    tm = M if M <= 1024 else 512
    if tm < M and tm % 8 != 0:
        tm = max(8, (tm // 8) * 8)
    out = pl.pallas_call(
        _relu_kernel,
        out_shape=jax.ShapeDtypeStruct((M, L), dt),
        grid=(pl.cdiv(M, tm),),
        in_specs=[pl.BlockSpec((tm, L), lambda i: (i, 0))],
        out_specs=pl.BlockSpec((tm, L), lambda i: (i, 0)),
        compiler_params=pltpu.CompilerParams(
            dimension_semantics=("parallel",),
            vmem_limit_bytes=_VMEM_LIMIT),
    )(x2)
    return out.reshape(shp)


# ------------------------------- the module ---------------------------------

class Deconv2dPallas:
    """JAX/Pallas counterpart of models.module.Deconv2d (forward pass only)."""

    def __init__(self, in_channels, out_channels, kernel_size, stride=1,
                 relu=True, bn=True, key=None):
        assert stride in (1, 2)
        self.in_channels = in_channels
        self.out_channels = out_channels
        self.k = kernel_size
        self.stride = stride
        self.relu = relu
        self.bn_enabled = bn
        self.eps = 1e-5

        key = jax.random.PRNGKey(0) if key is None else key
        kw_, kb_ = jax.random.split(key)
        K, s = kernel_size, stride
        fan_in = in_channels * K * K
        fan_out = out_channels * K * K
        bound = (6.0 / (fan_in + fan_out)) ** 0.5
        # ConvTranspose2d weight layout: (Cin, Cout, kH, kW), xavier-uniform.
        self.weight = jax.random.uniform(
            kw_, (in_channels, out_channels, K, K), jnp.float32, -bound, bound)
        if bn:
            self.gamma = jnp.ones((out_channels,), jnp.float32)   # init_bn
            self.beta = jnp.zeros((out_channels,), jnp.float32)
            self.bias = None
        else:
            b = 1.0 / (fan_in ** 0.5)
            self.bias = jax.random.uniform(kb_, (out_channels,), jnp.float32,
                                           -b, b)
            self.gamma = self.beta = None

        # ------- static weight folding (hoisted out of the forward pass) -----
        # Union-tap / phase-folded weight: rows = (uh, uw, ci), cols = (ph, pw, co)
        self.Khm = -(-K // s)                       # ceil(K / s)
        nt = self.Khm * self.Khm
        self.Kc = nt * in_channels
        self.Kcp = _round_up(self.Kc, 16)
        self.groups = s * s
        self.CoutB = _round_up(self.groups * out_channels, 128)
        rows = []
        for uh in range(self.Khm):
            for uw in range(self.Khm):
                cols = []
                for ph in range(s):
                    for pw in range(s):
                        kh = s * (self.Khm - 1 - uh) + ph
                        kw = s * (self.Khm - 1 - uw) + pw
                        if kh < K and kw < K:
                            cols.append(self.weight[:, :, kh, kw])
                        else:
                            cols.append(jnp.zeros(
                                (in_channels, out_channels), jnp.float32))
                rows.append(jnp.concatenate(cols, axis=1))
        wbig = jnp.concatenate(rows, axis=0)        # (Kc, s*s*Cout)
        wbig = jnp.pad(wbig, ((0, self.Kcp - self.Kc),
                              (0, self.CoutB - self.groups * out_channels)))
        self.wbig = wbig.astype(jnp.bfloat16)

    # Adaptive row tile under the generation-aware VMEM budget.
    def _pick_row_tile(self, Qh, Qwp):
        per_row = Qwp * (2 * 2 * self.Kcp                # patch, 2-buffered bf16
                         + self.CoutB * (2 * 4 + 4 + 2))  # out 2-buf f32 + acc + slack
        budget = max(_VMEM_LIMIT // 4, 1 << 20)
        tr = max(8, budget // max(per_row, 1))
        tr = max(1, min(Qh, tr))
        if Qh >= 16:
            tr = min(tr, -(-Qh // 2))   # >=2 row tiles: megacore even for N==1
        return int(tr)

    def __call__(self, x):
        # x: (N, Cin, H, W) float32
        N, Cin, H, W = x.shape
        K, s = self.k, self.stride
        Cout = self.out_channels

        if not self.bn_enabled:
            # Reference quirk: with bn=None the conv output is never assigned
            # back, so forward returns (relu of) the ORIGINAL input.
            return relu_pallas(x) if self.relu else x

        Hf, Wf = (H - 1) * s + K, (W - 1) * s + K     # full deconv extents
        Ho = min(s * H, Hf) if s == 2 else Hf          # reference crop
        Wo = min(s * W, Wf) if s == 2 else Wf
        Qh = H if s == 2 else Hf                       # per-phase extents
        Qw = W if s == 2 else Wf
        Qwp = _round_up(Qw, 16)

        tr = self._pick_row_tile(Qh, Qwp)
        Qhp = _round_up(Qh, tr)
        Khm = self.Khm
        gC = self.groups * Cout

        # ----- host-side aligned patch build (union taps folded into lanes) --
        xh = jnp.transpose(x, (0, 2, 3, 1)).astype(jnp.bfloat16)   # NHWC bf16
        xpad = jnp.pad(xh, ((0, 0), (Khm - 1, Qh - H),
                            (Khm - 1, Qw - W), (0, 0)))
        taps = [xpad[:, uh:uh + Qh, uw:uw + Qw, :]
                for uh in range(Khm) for uw in range(Khm)]
        patch = jnp.concatenate(taps, axis=-1)                     # (N,Qh,Qw,Kc)
        # Zero-pad spatial/contraction so out-of-range rows/cols produce
        # exactly-zero outputs (keeps the BN statistics exact for any H/W).
        patch = jnp.pad(patch, ((0, 0), (0, Qhp - Qh), (0, Qwp - Qw),
                                (0, self.Kcp - self.Kc)))

        # ----- pass 1: BN batch statistics (no conv intermediate in HBM) -----
        stats = _deconv_stats(patch, self.wbig, tr)        # (N, R, 2, CoutB)
        tot = jnp.sum(stats, axis=(0, 1))                  # (2, CoutB)
        tot = tot[:, :gC].reshape(2, self.groups, Cout).sum(axis=1)
        cnt = float(N * Ho * Wo)
        mean = tot[0] / cnt
        var = jnp.maximum(tot[1] / cnt - mean * mean, 0.0)
        inv = jax.lax.rsqrt(var + self.eps)
        scale_c = self.gamma * inv
        shift_c = self.beta - mean * scale_c
        scale = jnp.pad(jnp.tile(scale_c, self.groups),
                        (0, self.CoutB - gC)).reshape(1, self.CoutB)
        shift = jnp.pad(jnp.tile(shift_c, self.groups),
                        (0, self.CoutB - gC)).reshape(1, self.CoutB)

        # ----- pass 2: recompute matmul, normalize(+ReLU), write final -------
        y = _deconv_norm(patch, self.wbig, scale, shift, tr, self.relu)
        y = y[:, :Qh, :Qw, :gC]
        if s == 1:
            z = y
        else:
            z = y.reshape(N, Qh, Qw, s, s, Cout)
            z = z.transpose(0, 1, 3, 2, 4, 5).reshape(N, Qh * s, Qw * s, Cout)
        z = z[:, :Ho, :Wo, :]
        return jnp.transpose(z, (0, 3, 1, 2))              # NCHW


# ---------------------------------- demo ------------------------------------

if __name__ == "__main__":
    key = jax.random.PRNGKey(0)
    kx, kp = jax.random.split(key)

    N, Cin, H, W = 2, 4, 16, 16
    Cout, K, s = 8, 3, 2
    x = jax.random.normal(kx, (N, Cin, H, W), jnp.float32)

    mod = Deconv2dPallas(Cin, Cout, K, stride=s, relu=True, bn=True, key=kp)
    out = jax.block_until_ready(mod(x))
    assert out.shape == (N, Cout, 2 * H, 2 * W), out.shape

    # ---- independent reference (XLA dilated conv + batch-stats BN + ReLU) ----
    # Inputs quantized to bf16 to match the kernel's MXU input precision.
    xq = x.astype(jnp.bfloat16).astype(jnp.float32)
    wq = mod.weight.astype(jnp.bfloat16).astype(jnp.float32)
    w_hwio = jnp.flip(wq, axis=(2, 3)).transpose(2, 3, 0, 1)     # (K,K,Cin,Cout)
    x_nhwc = xq.transpose(0, 2, 3, 1)
    y_ref = jax.lax.conv_general_dilated(
        x_nhwc, w_hwio, window_strides=(1, 1),
        padding=[(K - 1, K - 1), (K - 1, K - 1)], lhs_dilation=(s, s),
        dimension_numbers=("NHWC", "HWIO", "NHWC"),
        precision=jax.lax.Precision.HIGHEST)
    y_ref = y_ref[:, :2 * H, :2 * W, :]
    mean = y_ref.mean(axis=(0, 1, 2))
    var = ((y_ref - mean) ** 2).mean(axis=(0, 1, 2))
    ref = jnp.maximum((y_ref - mean) * jax.lax.rsqrt(var + 1e-5), 0.0)
    ref = ref.transpose(0, 3, 1, 2)
    max_err = float(jnp.abs(out - ref).max())
    assert jnp.allclose(out, ref, rtol=2e-2, atol=2e-2), max_err

    print("KERNEL_OK")
</pallas_src>

<mosaic_0001>
module attributes {stable_mosaic.version = 11 : i64} {
  func.func @_deconv_stats_kernel(%arg0: i32, %arg1: i32, %arg2: memref<1x8x16x16xbf16, #tpu.memory_space<vmem>>, %arg3: memref<16x128xbf16, #tpu.memory_space<vmem>>, %arg4: memref<1x1x2x128xf32, #tpu.memory_space<vmem>>) attributes {dimension_semantics = [#tpu.dimension_semantics<parallel>, #tpu.dimension_semantics<parallel>], iteration_bounds = array<i64: 2, 2>, scalar_prefetch = 0 : i64, scratch_operands = 0 : i64, tpu.core_type = #tpu.core_type<tc>, window_params = [{transform_indices = @transform_0, window_bounds = array<i64: 1, 8, 16, 16>}, {pipeline_mode = #tpu.pipeline_mode<synchronous>, transform_indices = @transform_1, window_bounds = array<i64: 16, 128>}, {transform_indices = @transform_2, window_bounds = array<i64: 1, 1, 2, 128>}]} {
    %c0 = arith.constant 0 : index
    %c0_0 = arith.constant 0 : index
    %c0_1 = arith.constant 0 : index
    %c0_2 = arith.constant 0 : index
    %0 = vector.load %arg2[%c0, %c0_0, %c0_1, %c0_2] : memref<1x8x16x16xbf16, #tpu.memory_space<vmem>>, vector<1x8x16x16xbf16>
    %1 = vector.shape_cast %0 : vector<1x8x16x16xbf16> to vector<8x16x16xbf16>
    %2 = vector.shape_cast %1 : vector<8x16x16xbf16> to vector<128x16xbf16>
    %c0_3 = arith.constant 0 : index
    %c0_4 = arith.constant 0 : index
    %3 = vector.load %arg3[%c0_3, %c0_4] : memref<16x128xbf16, #tpu.memory_space<vmem>>, vector<16x128xbf16>
    %cst = arith.constant dense<0.000000e+00> : vector<128x128xf32>
    %4 = tpu.matmul %2, %3, %cst {dimension_numbers = #tpu.dot_dimension_numbers<[1], [0], [0], [1], [0, 0, 1, 1], [], []>} : vector<128x16xbf16>, vector<16x128xbf16>, vector<128x128xf32> -> vector<128x128xf32>
    %cst_5 = arith.constant dense<0.000000e+00> : vector<128xf32>
    %5 = vector.multi_reduction <add>, %4, %cst_5 [0] : vector<128x128xf32> to vector<128xf32>
    %6 = vector.shape_cast %5 : vector<128xf32> to vector<1x128xf32>
    %7 = arith.mulf %4, %4 : vector<128x128xf32>
    %cst_6 = arith.constant dense<0.000000e+00> : vector<128xf32>
    %8 = vector.multi_reduction <add>, %7, %cst_6 [0] : vector<128x128xf32> to vector<128xf32>
    %9 = vector.shape_cast %8 : vector<128xf32> to vector<1x128xf32>
    %10 = tpu.concatenate %6, %9 in 0 : vector<1x128xf32>, vector<1x128xf32> -> vector<2x128xf32>
    %c0_7 = arith.constant 0 : index
    %c0_8 = arith.constant 0 : index
    %c0_9 = arith.constant 0 : index
    %c0_10 = arith.constant 0 : index
    %11 = vector.load %arg4[%c0_7, %c0_8, %c0_9, %c0_10] : memref<1x1x2x128xf32, #tpu.memory_space<vmem>>, vector<1x1x2x128xf32>
    %12 = vector.shape_cast %11 : vector<1x1x2x128xf32> to vector<2x128xf32>
    %13 = vector.shape_cast %10 : vector<2x128xf32> to vector<1x1x2x128xf32>
    tpu.vector_store %arg4[%c0_7, %c0_8, %c0_9, %c0_10], %13 {strides = array<i32>} : memref<1x1x2x128xf32, #tpu.memory_space<vmem>>, vector<1x1x2x128xf32>,
    return
  }
  func.func @transform_0(%arg0: i32, %arg1: i32) -> (i32, i32, i32, i32) {
    %c0_i32 = arith.constant 0 : i32
    %c0_i32_0 = arith.constant 0 : i32
    %c0_i32_1 = arith.constant 0 : i32
    return %arg0, %arg1, %c0_i32, %c0_i32_0 : i32, i32, i32, i32
  }
  func.func @transform_1(%arg0: i32, %arg1: i32) -> (i32, i32) {
    %c0_i32 = arith.constant 0 : i32
    %c0_i32_0 = arith.constant 0 : i32
    %c0_i32_1 = arith.constant 0 : i32
    return %c0_i32, %c0_i32_0 : i32, i32
  }
  func.func @transform_2(%arg0: i32, %arg1: i32) -> (i32, i32, i32, i32) {
    %c0_i32 = arith.constant 0 : i32
    %c0_i32_0 = arith.constant 0 : i32
    %c0_i32_1 = arith.constant 0 : i32
    return %arg0, %arg1, %c0_i32, %c0_i32_0 : i32, i32, i32, i32
  }
}

</mosaic_0001>

<llo_original>
// kernel: tpu_custom_call.1
$region0: #{tpu_custom_call.1}
  #allocation0 [shape = 'u32[]', space=smem, size = 0x4, offset = 0x4, fixed_abs, tag = 'smem constant byte address 0x4 - core index']
  #allocation1 [shape = 'u32[144,128]{1,0:T(1,128)}', space=vmem, size = 0x12000, scoped, tag = 'internal scratch']
  %s0 = inlined_call_operand.hbm [shape: bf16[2,16,16,16], index: 0, kind: input, shape index: {}]
  %s1 = inlined_call_operand.hbm [shape: bf16[16,128], index: 1, kind: input, shape index: {}]
  %s2 = inlined_call_operand.hbm [shape: f32[2,2,2,128], index: 2, kind: output, shape index: {}]
  %s3 = sld [smem:[#allocation0]]
  $region49: #{tpu_custom_call.1} parent=0
    _
  %s5 = ssub.s32 1, %s3
  %s6 = scalar_select 0, %s5, %s3
  $region1: #{tpu_custom_call.1} parent=0
    #allocation2 [shape = 'u8[65536]{0}', space=vmem, size = 0x10000, scoped, tag = 'input window, operand 0']
    #allocation3 [shape = 's32[2]{0}', space=sflag, size = 0x8, scoped, tag = 'scoped memory for tpu_custom_call.1']
    #allocation4 [shape = 's32[2]{0}', space=sflag, size = 0x8, scoped, tag = 'scoped memory for tpu_custom_call.1']
    #allocation5 [shape = 'u8[4096]{0}', space=vmem, size = 0x1000, scoped, tag = 'input window, operand 1, single buffered']
    #allocation6 [shape = 's32[1]{0}', space=sflag, size = 0x4, scoped, tag = 'scoped memory for tpu_custom_call.1']
    #allocation7 [shape = 'u8[2048]{0}', space=vmem, size = 0x800, scoped, tag = 'output window, operand 0']
    %7 = vsyncpa [#allocation3], 0
    %s8 = scalar_lea.sflag [#allocation3], 1
    %9 = vsyncpa %s8, 0
    %10 = vsyncpa [#allocation6], 0
    %11 = vsyncpa [#allocation4], 0
    %s12 = scalar_lea.sflag [#allocation4], 1
    %13 = vsyncpa %s12, 0
    loop: start=0, step=1, limit=6
    $region2: #{tpu_custom_call.1} parent=1 // loop_pre_header
      _
    $region3: #{tpu_custom_call.1} parent=1 // loop_header
      %s15 = sphi 0, %s19
      %p16 = scmp.ge.s32.totalorder %s15, 6
      %s22 = sphi 0, %s34
      %s23 = sphi 0, %s30
      %s24 = sphi 0, %s22
      %s25 = sphi 0, %s23
      %s26 = sphi 0, %s24
      %s27 = sphi 0, %s25
      %s39 = sphi 0, %s41
      %s42 = sphi 0, %s39
      %s43 = sphi 0, %s42
      %s59 = sphi 0, %s43
      %s63 = sphi 0, %s63
      %s65 = sphi 0, %s63
      %s66 = sphi 0, %s65
      %s80 = sphi 0, %s66
      %s88 = sphi 0, %s90
      %s91 = sphi 0, %s88
      %s92 = sphi 0, %s91
      %s108 = sphi 0, %s92
    $region4: #{tpu_custom_call.1} parent=1 // loop_header_branch
      %18 = sbr.rel (%p16) target = $region8
    $region5: #{tpu_custom_call.1} parent=1 // loop_body
      %s20 = ssub.s32 %s15, 1
      %s21 = ssub.s32 %s15, 2
      %s28 = sadd.s32 1, %s23
      %p29 = scmp.ge.s32.totalorder %s28, 2
      %s30 = scalar_select %p29, 0, %s28
      %s31 = sadd.s32 1, %s22
      %s32 = scalar_select %p29, %s31, %s22
      %p33 = scmp.ge.s32.totalorder %s32, 2
      %s34 = scalar_select %p33, 0, %s32
      %s35 = ssub.s32 %s22, %s34
      %s36 = ssub.s32 %s23, %s30
      %s37 = sor.u32 %s35, %s36
      %p38 = scmp.eq.s32.totalorder %s37, 0
      %s40 = sadd.s32 %s39, 1
      %s41 = scalar_select %p38, %s39, %s40
      %p44 = pneg %p38
      %p45 = scmp.eq.s32.totalorder %s15, 3
      %p46 = por %p44, %p45
      %p47 = scmp.ne.s32.totalorder %s39, %s42
      %p48 = scmp.eq.s32.totalorder %s15, 0
      %p49 = por %p47, %p48
      %p50 = scmp.ne.s32.totalorder %s39, %s42
      %p51 = scmp.eq.s32.totalorder %s20, 3
      %p52 = por %p50, %p51
      %p53 = scmp.ne.s32.totalorder %s42, %s43
      %p54 = scmp.eq.s32.totalorder %s20, 0
      %p55 = por %p53, %p54
      %p56 = scmp.ne.s32.totalorder %s42, %s43
      %p57 = scmp.eq.s32.totalorder %s21, 3
      %p58 = por %p56, %p57
      %p60 = scmp.ne.s32.totalorder %s43, %s59
      %p61 = scmp.eq.s32.totalorder %s21, 0
      %p62 = por %p60, %p61
      %s64 = sadd.s32 %s63, 1
      %p67 = scmp.eq.s32.totalorder %s15, 3
      %p68 = scmp.ne.s32.totalorder %s63, %s65
      %p69 = scmp.eq.s32.totalorder %s15, 0
      %p70 = por %p68, %p69
      %p71 = scmp.ne.s32.totalorder %s63, %s65
      %p72 = scmp.eq.s32.totalorder %s20, 3
      %p73 = por %p71, %p72
      %p74 = scmp.ne.s32.totalorder %s65, %s66
      %p75 = scmp.eq.s32.totalorder %s20, 0
      %p76 = por %p74, %p75
      %p77 = scmp.ne.s32.totalorder %s65, %s66
      %p78 = scmp.eq.s32.totalorder %s21, 3
      %p79 = por %p77, %p78
      %p81 = scmp.ne.s32.totalorder %s66, %s80
      %p82 = scmp.eq.s32.totalorder %s21, 0
      %p83 = por %p81, %p82
      %s84 = ssub.s32 %s22, %s34
      %s85 = ssub.s32 %s23, %s30
      %s86 = sor.u32 %s84, %s85
      %p87 = scmp.eq.s32.totalorder %s86, 0
      %s89 = sadd.s32 %s88, 1
      %s90 = scalar_select %p87, %s88, %s89
      %p93 = pneg %p87
      %p94 = scmp.eq.s32.totalorder %s15, 3
      %p95 = por %p93, %p94
      %p96 = scmp.ne.s32.totalorder %s88, %s91
      %p97 = scmp.eq.s32.totalorder %s15, 0
      %p98 = por %p96, %p97
      %p99 = scmp.ne.s32.totalorder %s88, %s91
      %p100 = scmp.eq.s32.totalorder %s20, 3
      %p101 = por %p99, %p100
      %p102 = scmp.ne.s32.totalorder %s91, %s92
      %p103 = scmp.eq.s32.totalorder %s20, 0
      %p104 = por %p102, %p103
      %p105 = scmp.ne.s32.totalorder %s91, %s92
      %p106 = scmp.eq.s32.totalorder %s21, 3
      %p107 = por %p105, %p106
      %p109 = scmp.ne.s32.totalorder %s92, %s108
      %p110 = scmp.eq.s32.totalorder %s21, 0
      %p111 = por %p109, %p110
      %p112 = scmp.le.s32.totalorder 1, %s15
      %p113 = scmp.lt.s32.totalorder %s15, 5
      %p114 = pnand %p112, %p113
      %p115 = pneg %p114
      // Predicated region
      $region9: #{tpu_custom_call.1} parent=5 // pred_check
        _
      $region10: #{tpu_custom_call.1} parent=5 // pred_check_branch
        %117 = sbr.rel (%p114) target = $region12
      $region11: #{tpu_custom_call.1} parent=5 // pred_region
        %s118 = ssub.s32 %s15, 1
        // Predicated region
        $region13: #{tpu_custom_call.1} parent=11 // pred_check
          %p119 = pneg %p76
        $region14: #{tpu_custom_call.1} parent=11 // pred_check_branch
          %121 = sbr.rel (%p119) target = $region16
        $region15: #{tpu_custom_call.1} parent=11 // pred_region
          %s123 = ssub.s32 128, 128
          %124 = vsyncadd [#allocation6], %s123
          %s125 = sshll.u32 [#allocation5], 4
          %s126 = int_to_ptr.vmem [resolvable:$true] %s125
          %131 = dma.hbm_to_vmem [thread:$0]  %s1, 128, %s126, [#allocation6], 64, 64, 4
        $region16: #{tpu_custom_call.1} parent=11 // pred_fallthru
          _
      $region12: #{tpu_custom_call.1} parent=5 // pred_fallthru
        _
      %p132 = scmp.lt.s32.totalorder %s15, 4
      // Predicated region
      $region17: #{tpu_custom_call.1} parent=5 // pred_check
        %p133 = pneg %p132
      $region18: #{tpu_custom_call.1} parent=5 // pred_check_branch
        %135 = sbr.rel (%p133) target = $region20
      $region19: #{tpu_custom_call.1} parent=5 // pred_region
        // Predicated region
        $region21: #{tpu_custom_call.1} parent=19 // pred_check
          %p136 = pneg %p49
        $region22: #{tpu_custom_call.1} parent=19 // pred_check_branch
          %138 = sbr.rel (%p136) target = $region24
        $region23: #{tpu_custom_call.1} parent=19 // pred_region
          %s139 = sand.u32 %s39, 1
          %s140 = scalar_lea.sflag [#allocation3], %s139
          %s141 = sand.u32 %s39, 1
          %s142 = smul.addr %s141, 64
          %s143 = scalar_lea.vmem [#allocation2], %s142
          %s144 = smul.u32 8, %s23
          %s146 = ssub.s32 1024, 1024
          %147 = vsyncadd %s140, %s146
          %s148 = smul.addr %s144, 2
          %s149 = smul.addr %s22, 32
          %s150 = sadd.s32 %s148, %s149
          %s151 = smul.addr %s150, 64
          %s152 = scalar_lea.hbm %s0, %s151
          %s153 = sshll.u32 %s143, 4
          %s154 = int_to_ptr.vmem [resolvable:$true] %s153
          %159 = dma.hbm_to_vmem [thread:$0]  %s152, 1024, %s154, %s140, 64, 64, 4
        $region24: #{tpu_custom_call.1} parent=19 // pred_fallthru
          _
      $region20: #{tpu_custom_call.1} parent=5 // pred_fallthru
        _
      %p160 = scmp.le.s32.totalorder 1, %s15
      %p161 = scmp.lt.s32.totalorder %s15, 5
      %p162 = pnand %p160, %p161
      %p163 = pneg %p162
      // Predicated region
      $region25: #{tpu_custom_call.1} parent=5 // pred_check
        _
      $region26: #{tpu_custom_call.1} parent=5 // pred_check_branch
        %165 = sbr.rel (%p162) target = $region28
      $region27: #{tpu_custom_call.1} parent=5 // pred_region
        %s166 = ssub.s32 %s15, 1
        %s167 = sand.u32 %s42, 1
        %s168 = scalar_lea.sflag [#allocation3], %s167
        %s169 = sand.u32 %s42, 1
        %s170 = smul.addr %s169, 64
        %s171 = scalar_lea.vmem [#allocation2], %s170
        // Predicated region
        $region29: #{tpu_custom_call.1} parent=27 // pred_check
          %p172 = pneg %p55
        $region30: #{tpu_custom_call.1} parent=27 // pred_check_branch
          %174 = sbr.rel (%p172) target = $region32
        $region31: #{tpu_custom_call.1} parent=27 // pred_region
          %175 = dma.done %s168, 1024
        $region32: #{tpu_custom_call.1} parent=27 // pred_fallthru
          _
        // Predicated region
        $region33: #{tpu_custom_call.1} parent=27 // pred_check
          %p176 = pneg %p76
        $region34: #{tpu_custom_call.1} parent=27 // pred_check_branch
          %178 = sbr.rel (%p176) target = $region36
        $region35: #{tpu_custom_call.1} parent=27 // pred_region
          %179 = dma.done [#allocation6], 128
        $region36: #{tpu_custom_call.1} parent=27 // pred_fallthru
          _
        %s180 = sand.u32 %s42, 1
        %s181 = scalar_lea.sflag [#allocation3], %s180
        %s182 = sand.u32 %s42, 1
        %s183 = smul.addr %s182, 64
        %s184 = scalar_lea.vmem [#allocation2], %s183
        %p185 = pneg %p55
        %p186 = pneg %p52
        %p187 = pneg %p76
        %p188 = pneg %p73
        %p189 = pneg %p104
        %p190 = pneg %p101
        %s191 = sand.u32 %s91, 1
        %s192 = scalar_lea.sflag [#allocation4], %s191
        %s193 = sand.u32 %s91, 1
        %s194 = smul.addr %s193, 2
        %s195 = scalar_lea.vmem [#allocation7], %s194
        %s196 = smul.u32 8, %s25
        %v198 = vld [vmem:[%s171] sm:$0xf]
        %v199 = vld [vmem:[%s171 + $0x4] sm:$0xf]
        %v200 = vld [vmem:[%s171 + $0x8] sm:$0xf]
        %v201 = vld [vmem:[%s171 + $0xc] sm:$0xf]
        %v202 = vld [vmem:[%s171 + $0x10] sm:$0xf]
        %v203 = vld [vmem:[%s171 + $0x14] sm:$0xf]
        %v204 = vld [vmem:[%s171 + $0x18] sm:$0xf]
        %v205 = vld [vmem:[%s171 + $0x1c] sm:$0xf]
        %v206 = vld [vmem:[%s171 + $0x20] sm:$0xf]
        %v207 = vld [vmem:[%s171 + $0x24] sm:$0xf]
        %v208 = vld [vmem:[%s171 + $0x28] sm:$0xf]
        %v209 = vld [vmem:[%s171 + $0x2c] sm:$0xf]
        %v210 = vld [vmem:[%s171 + $0x30] sm:$0xf]
        %v211 = vld [vmem:[%s171 + $0x34] sm:$0xf]
        %v212 = vld [vmem:[%s171 + $0x38] sm:$0xf]
        %v213 = vld [vmem:[%s171 + $0x3c] sm:$0xf]
        %v214 = vld [vmem:[#allocation5] sm:$0xf]
        %v215 = vld [vmem:[#allocation5 + $0x4] sm:$0xf]
        %v232 = vunpack.c.l.b16 %v198
        %v233 = vunpack.c.l.b16 %v199
        %v234 = vunpack.c.l.b16 %v200
        %v235 = vunpack.c.l.b16 %v201
        %v236 = vunpack.c.l.b16 %v202
        %v237 = vunpack.c.l.b16 %v203
        %v238 = vunpack.c.l.b16 %v204
        %v239 = vunpack.c.l.b16 %v205
        %v240 = vunpack.c.l.b16 %v206
        %v241 = vunpack.c.l.b16 %v207
        %v242 = vunpack.c.l.b16 %v208
        %v243 = vunpack.c.l.b16 %v209
        %v244 = vunpack.c.l.b16 %v210
        %v245 = vunpack.c.l.b16 %v211
        %v246 = vunpack.c.l.b16 %v212
        %v247 = vunpack.c.l.b16 %v213
        %v248 = vpack.c.b16 %v233, %v232
        %v249 = vpack.c.b16 %v235, %v234
        %v250 = vpack.c.b16 %v237, %v236
        %v251 = vpack.c.b16 %v239, %v238
        %v252 = vpack.c.b16 %v241, %v240
        %v253 = vpack.c.b16 %v243, %v242
        %v254 = vpack.c.b16 %v245, %v244
        %v255 = vpack.c.b16 %v247, %v246
        %v258 = vunpack.c.l.b16 %v214
        %v259 = vunpack.c.l.b16 %v215
        %v260 = vpack.c.b16 %v259, %v258
        %vm262 = vcmask 130048
        %v264 = vsel %vm262, %v248, 0
        %v267 = vsel %vm262, %v249, 0
        %v270 = vsel %vm262, %v250, 0
        %v273 = vsel %vm262, %v251, 0
        %v276 = vsel %vm262, %v252, 0
        %v279 = vsel %vm262, %v253, 0
        %v282 = vsel %vm262, %v254, 0
        %v285 = vsel %vm262, %v255, 0
        %287 = vmatprep.subr.bf16.mxu0 0
        %288 = vmatpush1.bf16.msra.mxu0 0
        %289 = vmatprep.subr.bf16.mxu0 0
        %290 = vmatpush1.bf16.msra.mxu0 0
        %291 = vmatprep.subr.bf16.mxu0 0
        %292 = vmatpush1.bf16.msra.mxu0 0
        %293 = vmatprep.subr.bf16.mxu0 0
        %294 = vmatpush1.bf16.msra.mxu0 0
        %295 = vmatprep.subr.bf16.mxu0 0
        %296 = vmatpush1.bf16.msra.mxu0 0
        %297 = vmatprep.subr.bf16.mxu0 0
        %298 = vmatpush1.bf16.msra.mxu0 0
        %299 = vmatprep.subr.bf16.mxu0 0
        %300 = vmatpush1.bf16.msra.mxu0 0
        %301 = vmatprep.subr.bf16.mxu0 0
        %302 = vmatpush1.bf16.msra.mxu0 %v260
        %303 = vmatprep.subr.bf16.mxu0 0
        %304 = vmatpush2.bf16.msra.mxu0 0
        %305 = vmatprep.subr.bf16.mxu0 0
        %306 = vmatpush2.bf16.msra.mxu0 0
        %307 = vmatprep.subr.bf16.mxu0 0
        %308 = vmatpush2.bf16.msra.mxu0 0
        %309 = vmatprep.subr.bf16.mxu0 0
        %310 = vmatpush2.bf16.msra.mxu0 0
        %311 = vmatprep.subr.bf16.mxu0 0
        %312 = vmatpush2.bf16.msra.mxu0 0
        %313 = vmatprep.subr.bf16.mxu0 0
        %314 = vmatpush2.bf16.msra.mxu0 0
        %315 = vmatprep.subr.bf16.mxu0 0
        %316 = vmatpush2.bf16.msra.mxu0 0
        %317 = vmatprep.subr.bf16.mxu0 0
        %318 = vmatpush2.bf16.msra.mxu0 0
        %319 = vmatprep.mubr.bf16.mxu0 0
        %320 = vmatmul.mubr.bf16.gmra.mxu0 %v264
        %v321 = vpop.f32.mrf.mxu0
        %v322 = vadd.f32 0.0, %v321
        %v323 = vpop.f32.mrf.mxu0
        %v324 = vpop.f32.mrf.mxu0
        %v325 = vadd.f32 0.0, %v324
        %v326 = vpop.f32.mrf.mxu0
        %327 = vmatprep.mubr.bf16.mxu0 0
        %328 = vmatmul.mubr.bf16.gmra.mxu0 %v267
        %v329 = vpop.f32.mrf.mxu0
        %v330 = vadd.f32 0.0, %v329
        %v331 = vpop.f32.mrf.mxu0
        %v332 = vpop.f32.mrf.mxu0
        %v333 = vadd.f32 0.0, %v332
        %v334 = vpop.f32.mrf.mxu0
        %335 = vmatprep.mubr.bf16.mxu0 0
        %336 = vmatmul.mubr.bf16.gmra.mxu0 %v270
        %v337 = vpop.f32.mrf.mxu0
        %v338 = vadd.f32 0.0, %v337
        %v339 = vpop.f32.mrf.mxu0
        %v340 = vpop.f32.mrf.mxu0
        %v341 = vadd.f32 0.0, %v340
        %v342 = vpop.f32.mrf.mxu0
        %343 = vmatprep.mubr.bf16.mxu0 0
        %344 = vmatmul.mubr.bf16.gmra.mxu0 %v273
        %v345 = vpop.f32.mrf.mxu0
        %v346 = vadd.f32 0.0, %v345
        %v347 = vpop.f32.mrf.mxu0
        %v348 = vpop.f32.mrf.mxu0
        %v349 = vadd.f32 0.0, %v348
        %v350 = vpop.f32.mrf.mxu0
        %351 = vmatprep.mubr.bf16.mxu0 0
        %352 = vmatmul.mubr.bf16.gmra.mxu0 %v276
        %v353 = vpop.f32.mrf.mxu0
        %v354 = vadd.f32 0.0, %v353
        %v355 = vpop.f32.mrf.mxu0
        %v356 = vpop.f32.mrf.mxu0
        %v357 = vadd.f32 0.0, %v356
        %v358 = vpop.f32.mrf.mxu0
        %359 = vmatprep.mubr.bf16.mxu0 0
        %360 = vmatmul.mubr.bf16.gmra.mxu0 %v279
        %v361 = vpop.f32.mrf.mxu0
        %v362 = vadd.f32 0.0, %v361
        %v363 = vpop.f32.mrf.mxu0
        %v364 = vpop.f32.mrf.mxu0
        %v365 = vadd.f32 0.0, %v364
        %v366 = vpop.f32.mrf.mxu0
        %367 = vmatprep.mubr.bf16.mxu0 0
        %368 = vmatmul.mubr.bf16.gmra.mxu0 %v282
        %v369 = vpop.f32.mrf.mxu0
        %v370 = vadd.f32 0.0, %v369
        %v371 = vpop.f32.mrf.mxu0
        %v372 = vpop.f32.mrf.mxu0
        %v373 = vadd.f32 0.0, %v372
        %v374 = vpop.f32.mrf.mxu0
        %375 = vmatprep.mubr.bf16.mxu0 0
        %376 = vmatmul.mubr.bf16.gmra.mxu0 %v285
        %v377 = vpop.f32.mrf.mxu0
        %v378 = vadd.f32 0.0, %v377
        %v379 = vpop.f32.mrf.mxu0
        %v380 = vpop.f32.mrf.mxu0
        %v381 = vadd.f32 0.0, %v380
        %v382 = vpop.f32.mrf.mxu0
        %383 = vdwg.mxu0
        %v384 = vadd.f32 %v322, %v325
        %v385 = vadd.f32 %v384, %v330
        %v386 = vadd.f32 %v385, %v333
        %v387 = vadd.f32 %v386, %v338
        %v388 = vadd.f32 %v387, %v341
        %v389 = vadd.f32 %v388, %v346
        %v390 = vadd.f32 %v389, %v349
        %v391 = vadd.f32 %v390, %v354
        %v392 = vadd.f32 %v391, %v357
        %v393 = vadd.f32 %v392, %v362
        %v394 = vadd.f32 %v393, %v365
        %v395 = vadd.f32 %v394, %v370
        %v396 = vadd.f32 %v395, %v373
        %v397 = vadd.f32 %v396, %v378
        %v398 = vadd.f32 %v397, %v381
        %v399 = vrot.slane %v398, 4
        %v400 = vadd.f32 %v398, %v399
        %v401 = vrot.slane %v400, 2
        %v402 = vadd.f32 %v400, %v401
        %v403 = vrot.slane %v402, 1
        %v404 = vadd.f32 %v402, %v403
        %v405 = vmul.f32 %v322, %v322
        %v406 = vmul.f32 %v325, %v325
        %v407 = vmul.f32 %v330, %v330
        %v408 = vmul.f32 %v333, %v333
        %v409 = vmul.f32 %v338, %v338
        %v410 = vmul.f32 %v341, %v341
        %v411 = vmul.f32 %v346, %v346
        %v412 = vmul.f32 %v349, %v349
        %v413 = vmul.f32 %v354, %v354
        %v414 = vmul.f32 %v357, %v357
        %v415 = vmul.f32 %v362, %v362
        %v416 = vmul.f32 %v365, %v365
        %v417 = vmul.f32 %v370, %v370
        %v418 = vmul.f32 %v373, %v373
        %v419 = vmul.f32 %v378, %v378
        %v420 = vmul.f32 %v381, %v381
        %v421 = vadd.f32 %v405, %v406
        %v422 = vadd.f32 %v421, %v407
        %v423 = vadd.f32 %v422, %v408
        %v424 = vadd.f32 %v423, %v409
        %v425 = vadd.f32 %v424, %v410
        %v426 = vadd.f32 %v425, %v411
        %v427 = vadd.f32 %v426, %v412
        %v428 = vadd.f32 %v427, %v413
        %v429 = vadd.f32 %v428, %v414
        %v430 = vadd.f32 %v429, %v415
        %v431 = vadd.f32 %v430, %v416
        %v432 = vadd.f32 %v431, %v417
        %v433 = vadd.f32 %v432, %v418
        %v434 = vadd.f32 %v433, %v419
        %v435 = vadd.f32 %v434, %v420
        %v436 = vrot.slane %v435, 4
        %v437 = vadd.f32 %v435, %v436
        %v438 = vrot.slane %v437, 2
        %v439 = vadd.f32 %v437, %v438
        %v440 = vrot.slane %v439, 1
        %v441 = vadd.f32 %v439, %v440
        %vm442 = vcmask 1040384
        %v443 = vsel %vm442, %v404, %v441
        %444 = vst [vmem:[%s195] sm:$0x3] %v443
        %s445 = sand.u32 %s91, 1
        %s446 = scalar_lea.sflag [#allocation4], %s445
        %s447 = sand.u32 %s91, 1
        %s448 = smul.addr %s447, 2
        %s449 = scalar_lea.vmem [#allocation7], %s448
        // Predicated region
        $region37: #{tpu_custom_call.1} parent=27 // pred_check
          %p450 = pneg %p101
        $region38: #{tpu_custom_call.1} parent=27 // pred_check_branch
          %452 = sbr.rel (%p450) target = $region40
        $region39: #{tpu_custom_call.1} parent=27 // pred_region
          %s454 = ssub.s32 32, 32
          %455 = vsyncadd %s446, %s454
          %s456 = smul.addr %s24, 2
          %s457 = sadd.s32 %s25, %s456
          %s458 = smul.addr %s457, 32
          %s459 = scalar_lea.hbm %s2, %s458
          %s461 = sshll.u32 %s449, 4
          %s462 = int_to_ptr.vmem [resolvable:$true] %s461
          %464 = dma.vmem_to_hbm [thread:$0]  %s462, 32, %s459, %s446
        $region40: #{tpu_custom_call.1} parent=27 // pred_fallthru
          _
      $region28: #{tpu_custom_call.1} parent=5 // pred_fallthru
        _
      %p465 = scmp.le.s32.totalorder 2, %s15
      // Predicated region
      $region41: #{tpu_custom_call.1} parent=5 // pred_check
        %p466 = pneg %p465
      $region42: #{tpu_custom_call.1} parent=5 // pred_check_branch
        %468 = sbr.rel (%p466) target = $region44
      $region43: #{tpu_custom_call.1} parent=5 // pred_region
        %s469 = ssub.s32 %s15, 2
        // Predicated region
        $region45: #{tpu_custom_call.1} parent=43 // pred_check
          %p470 = pneg %p107
        $region46: #{tpu_custom_call.1} parent=43 // pred_check_branch
          %472 = sbr.rel (%p470) target = $region48
        $region47: #{tpu_custom_call.1} parent=43 // pred_region
          %s473 = sand.u32 %s92, 1
          %s474 = scalar_lea.sflag [#allocation4], %s473
          %s475 = sand.u32 %s92, 1
          %s476 = smul.addr %s475, 2
          %s477 = scalar_lea.vmem [#allocation7], %s476
          %478 = dma.done %s474, 32
        $region48: #{tpu_custom_call.1} parent=43 // pred_fallthru
          _
      $region44: #{tpu_custom_call.1} parent=5 // pred_fallthru
        _
    $region6: #{tpu_custom_call.1} parent=1 // loop_footer
      %s19 = sadd.s32 1, %s15
    $region7: #{tpu_custom_call.1} parent=1 // loop_footer_branch
      %14 = sbr.rel target = $region3
    $region8: #{tpu_custom_call.1} parent=1 // loop_exit
      _
    %479 = vsyncpa [#allocation3], 1
    %s480 = scalar_lea.sflag [#allocation3], 1
    %481 = vsyncpa %s480, 1
    %482 = vsyncpa [#allocation6], 1
    %483 = vsyncpa [#allocation4], 1
    %s484 = scalar_lea.sflag [#allocation4], 1
    %485 = vsyncpa %s484, 1

</llo_original>
